<compile_context>
chip_gen: v7x
topology: tpu7x:2x2x1
jax: 0.10.0
libtpu: 0.0.40
codegen_flags: <defaults>
</compile_context>

<pallas_src>
import functools

import jax
import jax.numpy as jnp
from jax import lax
from jax.experimental import pallas as pl
from jax.experimental.pallas import tpu as pltpu


_LANES = 128


# ----------------------------------------------------------------------------
# Pallas kernel: fused (X @ W) followed by optional L1/L2 row normalization.
# Equivalent to:  y = Linear(bias=False)(x);  y = F.normalize(y, p, dim=-1)
# ----------------------------------------------------------------------------
def _proj_norm_kernel(x_ref, w_ref, o_ref, *, mode, eps):
    # bf16 operands, f32 accumulation on the MXU.
    y = jnp.dot(x_ref[...], w_ref[...], preferred_element_type=jnp.float32)
    if mode == "l2":
        sumsq = jnp.sum(y * y, axis=-1, keepdims=True)
        # 1 / max(||y||_2, eps) == rsqrt(max(sumsq, eps^2));  rsqrt -> EUP slot.
        inv = lax.rsqrt(jnp.maximum(sumsq, eps * eps))
        y = y * inv
    elif mode == "l1":
        denom = jnp.sum(jnp.abs(y), axis=-1, keepdims=True)
        inv = pl.reciprocal(jnp.maximum(denom, eps), approx=True)  # EUP
        y = y * inv
    elif mode == "none":
        pass
    else:
        raise ValueError(f"normalization mode not supported: {mode}")
    o_ref[...] = y.astype(o_ref.dtype)


def _pick_row_tile(m8, k, n_pad, *, tm_max=1024, vmem_budget=24 * 1024 * 1024):
    """Largest row tile (multiple of 8) whose double-buffered footprint fits."""
    tm = min(tm_max, m8)

    def footprint(t):
        # 2 buffers per pipelined operand: x (bf16), w (bf16), out (f32).
        return 2 * t * k * 2 + 2 * k * n_pad * 2 + 2 * t * n_pad * 4

    while tm > 8 and footprint(tm) > vmem_budget:
        tm = max(8, tm // 2)
    return tm


def proj_and_normalize(x2d, w, *, mode="none", eps=1e-12):
    """x2d: [M, K], w: [K, N]  ->  [M, N] float32 (optionally row-normalized)."""
    M, K = x2d.shape
    K2, N = w.shape
    assert K == K2, (K, K2)

    # Lane-dense output: pad N up to a multiple of 128 with zero columns.
    n_pad = max(_LANES, pl.cdiv(N, _LANES) * _LANES)
    if n_pad != N:
        w = jnp.pad(w, ((0, 0), (0, n_pad - N)))

    # Row tiling: pad M to a multiple of the tile (zero rows are harmless:
    # their norm is clamped to eps and they are sliced off below).
    m8 = pl.cdiv(M, 8) * 8
    tm = _pick_row_tile(m8, K, n_pad)
    m_pad = pl.cdiv(m8, tm) * tm
    if m_pad != M:
        x2d = jnp.pad(x2d, ((0, m_pad - M), (0, 0)))

    # bf16 MXU inputs, f32 accumulate inside the kernel.
    xb = x2d.astype(jnp.bfloat16)
    wb = w.astype(jnp.bfloat16)

    grid = (m_pad // tm,)
    kernel = functools.partial(_proj_norm_kernel, mode=mode, eps=eps)
    cost = pl.CostEstimate(
        flops=2 * m_pad * K * n_pad,
        transcendentals=m_pad,  # one rsqrt / reciprocal per row
        bytes_accessed=m_pad * K * 2 + K * n_pad * 2 + m_pad * n_pad * 4,
    )

    out = pl.pallas_call(
        kernel,
        out_shape=jax.ShapeDtypeStruct((m_pad, n_pad), jnp.float32),
        grid=grid,
        in_specs=[
            pl.BlockSpec((tm, K), lambda i: (i, 0)),       # row tile of x
            pl.BlockSpec((K, n_pad), lambda i: (0, 0)),    # full (padded) weight
        ],
        out_specs=pl.BlockSpec((tm, n_pad), lambda i: (i, 0)),
        compiler_params=pltpu.CompilerParams(
            dimension_semantics=("parallel",),             # megacore on v7x
            vmem_limit_bytes=32 * 1024 * 1024,             # safe on v5e/v6e/v7x
        ),
        cost_estimate=cost,
    )(xb, wb)

    return out[:M, :N]


# ----------------------------------------------------------------------------
# Stub sub-encoders (external modules in the original code).
# ----------------------------------------------------------------------------
def _vis_im2col(vis_input, patch):
    """NCHW image -> im2col rows for a stride-`patch`, kernel-`patch` conv.

    Row ordering is (b, h', w'), i.e. exactly the permute(0, 2, 3, 1) layout
    the reference forward produces before proj_v.
    """
    B, C, H, W = vis_input.shape
    Hp, Wp = H // patch, W // patch
    x = vis_input.reshape(B, C, Hp, patch, Wp, patch)
    x = jnp.transpose(x, (0, 2, 4, 1, 3, 5)).reshape(B * Hp * Wp, C * patch * patch)
    # TODO(synk): for large images this im2col could be gathered inside the
    # kernel (3-D grid over (B, Hp, Wp) with an NCHW BlockSpec) instead of
    # being materialized by XLA; left to XLA fusion under jit at these sizes.
    return x, (B, Hp, Wp)


def lang_encoder_stub(params, src_tokens):
    """Token-embedding lookup standing in for the TransformerEncoder."""
    emb = jnp.take(params["tok_emb"], src_tokens, axis=0)   # [B, S, ENC_EMBED]
    return emb, None                                        # (emb_l, loss)


# ----------------------------------------------------------------------------
# Module forward (semantics of TransformerVisLangDiscEncoder.forward)
# ----------------------------------------------------------------------------
def vislang_disc_encoder_forward(params, vis_input, src_tokens, src_lengths,
                                 *, vislang_embed_norm="l2",
                                 mmt_inference=False, training=False,
                                 patch=4):
    del src_lengths  # unused by the reference forward
    ret_v = vis_input is not None
    ret_l = training or (not mmt_inference)
    assert ret_v or ret_l, "Neither visual nor language features are available"

    emb_v = None
    if ret_v:
        x_cols, (B, Hp, Wp) = _vis_im2col(vis_input, patch)
        # Fused vision path: stub encoder_v (patch-embed linear) -> permute ->
        # proj_v (bias-free Linear) -> normalize, as ONE Pallas kernel with a
        # pre-composed weight. Valid only because the stub has no nonlinearity
        # between the two bias-free linears.
        w_fused = params["patch_w"] @ params["proj_v"]       # [C*P*P, VL_EMBED]
        emb_v = proj_and_normalize(x_cols, w_fused, mode=vislang_embed_norm)
        emb_v = emb_v.reshape(B, Hp, Wp, -1)                 # == permute(0,2,3,1)

    emb_l = loss = None
    if ret_l:
        emb_l, loss = lang_encoder_stub(params, src_tokens)
        Bl, S, D = emb_l.shape
        emb_l = proj_and_normalize(
            emb_l.reshape(-1, D), params["proj_l"], mode=vislang_embed_norm
        ).reshape(Bl, S, -1)

    return {"emb_v": emb_v, "emb_l": emb_l, "loss": loss}


# ----------------------------------------------------------------------------
# Driver
# ----------------------------------------------------------------------------
if __name__ == "__main__":
    key = jax.random.PRNGKey(0)
    k_img, k_tok, k_patch, k_emb, k_pv, k_pl = jax.random.split(key, 6)

    # Small shapes consistent with the module's forward.
    B, C, H, W = 2, 4, 16, 16      # vis_input (NCHW)
    PATCH = 4
    VIS_EMBED = 32                 # args.vis_encoder_embed_dim
    ENC_EMBED = 32                 # args.encoder_embed_dim
    VL_EMBED = 32                  # args.vislang_embed_dim
    S, VOCAB = 8, 100

    vis_input = jax.random.normal(k_img, (B, C, H, W), dtype=jnp.float32)
    src_tokens = jax.random.randint(k_tok, (B, S), 0, VOCAB, dtype=jnp.int32)
    src_lengths = jnp.full((B,), S, dtype=jnp.int32)

    # Deterministic synthetic parameters (shapes implied by __init__).
    params = {
        "patch_w": 0.02 * jax.random.normal(k_patch, (C * PATCH * PATCH, VIS_EMBED), jnp.float32),
        "tok_emb": 0.02 * jax.random.normal(k_emb, (VOCAB, ENC_EMBED), jnp.float32),
        "proj_v": 0.02 * jax.random.normal(k_pv, (VIS_EMBED, VL_EMBED), jnp.float32),
        "proj_l": 0.02 * jax.random.normal(k_pl, (ENC_EMBED, VL_EMBED), jnp.float32),
    }

    fwd = jax.jit(functools.partial(
        vislang_disc_encoder_forward,
        vislang_embed_norm="l2", mmt_inference=False, training=False,
        patch=PATCH))

    out = fwd(params, vis_input, src_tokens, src_lengths)
    jax.block_until_ready(out["emb_v"])
    jax.block_until_ready(out["emb_l"])

    # Light sanity checks: shapes + unit L2 norm along the last axis.
    assert out["emb_v"].shape == (B, H // PATCH, W // PATCH, VL_EMBED)
    assert out["emb_l"].shape == (B, S, VL_EMBED)
    assert jnp.allclose(jnp.linalg.norm(out["emb_v"], axis=-1), 1.0, atol=1e-4)
    assert jnp.allclose(jnp.linalg.norm(out["emb_l"], axis=-1), 1.0, atol=1e-4)
    assert out["loss"] is None

    print("KERNEL_OK")
</pallas_src>

<mosaic_0001>
module attributes {stable_mosaic.version = 11 : i64} {
  func.func @_proj_norm_kernel(%arg0: i32, %arg1: memref<16x32xbf16, #tpu.memory_space<vmem>>, %arg2: memref<32x128xbf16, #tpu.memory_space<vmem>>, %arg3: memref<16x128xf32, #tpu.memory_space<vmem>>) attributes {dimension_semantics = [#tpu.dimension_semantics<parallel>], iteration_bounds = array<i64: 1>, scalar_prefetch = 0 : i64, scratch_operands = 0 : i64, tpu.core_type = #tpu.core_type<tc>, window_params = [{transform_indices = @transform_0, window_bounds = array<i64: 16, 32>}, {pipeline_mode = #tpu.pipeline_mode<synchronous>, transform_indices = @transform_1, window_bounds = array<i64: 32, 128>}, {transform_indices = @transform_2, window_bounds = array<i64: 16, 128>}]} {
    %c0 = arith.constant 0 : index
    %c0_0 = arith.constant 0 : index
    %0 = vector.load %arg1[%c0, %c0_0] : memref<16x32xbf16, #tpu.memory_space<vmem>>, vector<16x32xbf16>
    %c0_1 = arith.constant 0 : index
    %c0_2 = arith.constant 0 : index
    %1 = vector.load %arg2[%c0_1, %c0_2] : memref<32x128xbf16, #tpu.memory_space<vmem>>, vector<32x128xbf16>
    %cst = arith.constant dense<0.000000e+00> : vector<16x128xf32>
    %2 = tpu.matmul %0, %1, %cst {dimension_numbers = #tpu.dot_dimension_numbers<[1], [0], [0], [1], [0, 0, 1, 1], [], []>} : vector<16x32xbf16>, vector<32x128xbf16>, vector<16x128xf32> -> vector<16x128xf32>
    %3 = arith.mulf %2, %2 : vector<16x128xf32>
    %cst_3 = arith.constant dense<0.000000e+00> : vector<16xf32>
    %4 = vector.multi_reduction <add>, %3, %cst_3 [1] : vector<16x128xf32> to vector<16xf32>
    %5 = vector.shape_cast %4 : vector<16xf32> to vector<16x1xf32>
    %cst_4 = arith.constant 1.000000e-24 : f32
    %6 = vector.broadcast %cst_4 : f32 to vector<16x1xf32>
    %7 = arith.maximumf %5, %6 : vector<16x1xf32>
    %8 = math.rsqrt %7 : vector<16x1xf32>
    %9 = vector.broadcast %8 : vector<16x1xf32> to vector<16x128xf32>
    %10 = arith.mulf %2, %9 : vector<16x128xf32>
    %c0_5 = arith.constant 0 : index
    %c0_6 = arith.constant 0 : index
    %11 = vector.load %arg3[%c0_5, %c0_6] : memref<16x128xf32, #tpu.memory_space<vmem>>, vector<16x128xf32>
    tpu.vector_store %arg3[%c0_5, %c0_6], %10 {strides = array<i32>} : memref<16x128xf32, #tpu.memory_space<vmem>>, vector<16x128xf32>,
    return
  }
  func.func @transform_0(%arg0: i32) -> (i32, i32) {
    %c0_i32 = arith.constant 0 : i32
    %c0_i32_0 = arith.constant 0 : i32
    return %arg0, %c0_i32 : i32, i32
  }
  func.func @transform_1(%arg0: i32) -> (i32, i32) {
    %c0_i32 = arith.constant 0 : i32
    %c0_i32_0 = arith.constant 0 : i32
    %c0_i32_1 = arith.constant 0 : i32
    return %c0_i32, %c0_i32_0 : i32, i32
  }
  func.func @transform_2(%arg0: i32) -> (i32, i32) {
    %c0_i32 = arith.constant 0 : i32
    %c0_i32_0 = arith.constant 0 : i32
    return %arg0, %c0_i32 : i32, i32
  }
}

module attributes {stable_mosaic.version = 11 : i64} {
  func.func @_proj_norm_kernel(%arg0: i32, %arg1: memref<32x64xbf16, #tpu.memory_space<vmem>>, %arg2: memref<64x128xbf16, #tpu.memory_space<vmem>>, %arg3: memref<32x128xf32, #tpu.memory_space<vmem>>) attributes {dimension_semantics = [#tpu.dimension_semantics<parallel>], iteration_bounds = array<i64: 1>, scalar_prefetch = 0 : i64, scratch_operands = 0 : i64, tpu.core_type = #tpu.core_type<tc>, window_params = [{transform_indices = @transform_0, window_bounds = array<i64: 32, 64>}, {pipeline_mode = #tpu.pipeline_mode<synchronous>, transform_indices = @transform_1, window_bounds = array<i64: 64, 128>}, {transform_indices = @transform_2, window_bounds = array<i64: 32, 128>}]} {
    %c0 = arith.constant 0 : index
    %c0_0 = arith.constant 0 : index
    %0 = vector.load %arg1[%c0, %c0_0] : memref<32x64xbf16, #tpu.memory_space<vmem>>, vector<32x64xbf16>
    %c0_1 = arith.constant 0 : index
    %c0_2 = arith.constant 0 : index
    %1 = vector.load %arg2[%c0_1, %c0_2] : memref<64x128xbf16, #tpu.memory_space<vmem>>, vector<64x128xbf16>
    %cst = arith.constant dense<0.000000e+00> : vector<32x128xf32>
    %2 = tpu.matmul %0, %1, %cst {dimension_numbers = #tpu.dot_dimension_numbers<[1], [0], [0], [1], [0, 0, 1, 1], [], []>} : vector<32x64xbf16>, vector<64x128xbf16>, vector<32x128xf32> -> vector<32x128xf32>
    %3 = arith.mulf %2, %2 : vector<32x128xf32>
    %cst_3 = arith.constant dense<0.000000e+00> : vector<32xf32>
    %4 = vector.multi_reduction <add>, %3, %cst_3 [1] : vector<32x128xf32> to vector<32xf32>
    %5 = vector.shape_cast %4 : vector<32xf32> to vector<32x1xf32>
    %cst_4 = arith.constant 1.000000e-24 : f32
    %6 = vector.broadcast %cst_4 : f32 to vector<32x1xf32>
    %7 = arith.maximumf %5, %6 : vector<32x1xf32>
    %8 = math.rsqrt %7 : vector<32x1xf32>
    %9 = vector.broadcast %8 : vector<32x1xf32> to vector<32x128xf32>
    %10 = arith.mulf %2, %9 : vector<32x128xf32>
    %c0_5 = arith.constant 0 : index
    %c0_6 = arith.constant 0 : index
    %11 = vector.load %arg3[%c0_5, %c0_6] : memref<32x128xf32, #tpu.memory_space<vmem>>, vector<32x128xf32>
    tpu.vector_store %arg3[%c0_5, %c0_6], %10 {strides = array<i32>} : memref<32x128xf32, #tpu.memory_space<vmem>>, vector<32x128xf32>,
    return
  }
  func.func @transform_0(%arg0: i32) -> (i32, i32) {
    %c0_i32 = arith.constant 0 : i32
    %c0_i32_0 = arith.constant 0 : i32
    return %arg0, %c0_i32 : i32, i32
  }
  func.func @transform_1(%arg0: i32) -> (i32, i32) {
    %c0_i32 = arith.constant 0 : i32
    %c0_i32_0 = arith.constant 0 : i32
    %c0_i32_1 = arith.constant 0 : i32
    return %c0_i32, %c0_i32_0 : i32, i32
  }
  func.func @transform_2(%arg0: i32) -> (i32, i32) {
    %c0_i32 = arith.constant 0 : i32
    %c0_i32_0 = arith.constant 0 : i32
    return %arg0, %c0_i32 : i32, i32
  }
}

</mosaic_0001>

<llo_original>
// kernel: vislang_disc_encoder_forward.3
$region0: #{vislang_disc_encoder_forward.3}
  #allocation0 [shape = 'u32[]', space=smem, size = 0x4, offset = 0x4, fixed_abs, tag = 'smem constant byte address 0x4 - core index']
  #allocation1 [shape = 'u32[144,128]{1,0:T(1,128)}', space=vmem, size = 0x12000, scoped, tag = 'internal scratch']
  %s0 = inlined_call_operand.vmem [shape: bf16[16,32], index: 0, kind: input, shape index: {}]
  %s1 = inlined_call_operand.vmem [shape: bf16[32,128], index: 1, kind: input, shape index: {}]
  %s2 = inlined_call_operand.vmem [shape: f32[16,128], index: 2, kind: output, shape index: {}]
  %s3 = sld [smem:[#allocation0]]
  $region18: #{vislang_disc_encoder_forward.3} parent=0
    _
  %s5 = ssub.s32 1, %s3
  %s6 = scalar_select 0, %s5, %s3
  // Predicated region
  $region2: #{vislang_disc_encoder_forward.3} parent=0 // pred_check
    _
  $region3: #{vislang_disc_encoder_forward.3} parent=0 // pred_check_branch
    %8 = sbr.rel (0) target = $region5
  $region4: #{vislang_disc_encoder_forward.3} parent=0 // pred_region
    _
  $region5: #{vislang_disc_encoder_forward.3} parent=0 // pred_fallthru
    _
  // Predicated region
  $region6: #{vislang_disc_encoder_forward.3} parent=0 // pred_check
    _
  $region7: #{vislang_disc_encoder_forward.3} parent=0 // pred_check_branch
    %10 = sbr.rel (0) target = $region9
  $region8: #{vislang_disc_encoder_forward.3} parent=0 // pred_region
    _
  $region9: #{vislang_disc_encoder_forward.3} parent=0 // pred_fallthru
    _
  %v12 = vld [vmem:[%s0] sm:$0xf]
  %v13 = vld [vmem:[%s0 + $0x4] sm:$0xf]
  %v14 = vld [vmem:[%s1] sm:$0xf]
  %v15 = vld [vmem:[%s1 + $0x4] sm:$0xf]
  %v16 = vld [vmem:[%s1 + $0x8] sm:$0xf]
  %v17 = vld [vmem:[%s1 + $0xc] sm:$0xf]
  %v20 = vunpack.c.l.b16 %v12
  %v21 = vunpack.c.l.b16 %v13
  %v22 = vpack.c.b16 %v21, %v20
  %v27 = vunpack.c.l.b16 %v14
  %v28 = vunpack.c.l.b16 %v15
  %v29 = vunpack.c.l.b16 %v16
  %v30 = vunpack.c.l.b16 %v17
  %v31 = vpack.c.b16 %v28, %v27
  %v32 = vpack.c.b16 %v30, %v29
  %vm35 = vcmask 261120
  %v37 = vsel %vm35, %v22, 0
  %39 = vmatprep.subr.bf16.mxu0 0
  %40 = vmatpush1.bf16.msra.mxu0 %v31
  %41 = vmatprep.subr.bf16.mxu0 0
  %42 = vmatpush1.bf16.msra.mxu0 %v32
  %43 = vmatprep.subr.bf16.mxu0 0
  %44 = vmatpush1.bf16.msra.mxu0 0
  %45 = vmatprep.subr.bf16.mxu0 0
  %46 = vmatpush1.bf16.msra.mxu0 0
  %47 = vmatprep.subr.bf16.mxu0 0
  %48 = vmatpush1.bf16.msra.mxu0 0
  %49 = vmatprep.subr.bf16.mxu0 0
  %50 = vmatpush1.bf16.msra.mxu0 0
  %51 = vmatprep.subr.bf16.mxu0 0
  %52 = vmatpush1.bf16.msra.mxu0 0
  %53 = vmatprep.subr.bf16.mxu0 0
  %54 = vmatpush1.bf16.msra.mxu0 0
  %55 = vmatprep.subr.bf16.mxu0 0
  %56 = vmatpush1.bf16.msra.mxu0 0
  %57 = vmatprep.subr.bf16.mxu0 0
  %58 = vmatpush1.bf16.msra.mxu0 0
  %59 = vmatprep.subr.bf16.mxu0 0
  %60 = vmatpush1.bf16.msra.mxu0 0
  %61 = vmatprep.subr.bf16.mxu0 0
  %62 = vmatpush1.bf16.msra.mxu0 0
  %63 = vmatprep.subr.bf16.mxu0 0
  %64 = vmatpush1.bf16.msra.mxu0 0
  %65 = vmatprep.subr.bf16.mxu0 0
  %66 = vmatpush1.bf16.msra.mxu0 0
  %67 = vmatprep.subr.bf16.mxu0 0
  %68 = vmatpush1.bf16.msra.mxu0 0
  %69 = vmatprep.subr.bf16.mxu0 0
  %70 = vmatpush1.bf16.msra.mxu0 0
  %71 = vmatprep.mubr.bf16.mxu0 0
  %72 = vmatmul.mubr.bf16.gmra.mrb[0].mxu0 %v37
  %v73 = vpop.f32.mrb[0].mxu0
  %v74 = vadd.f32 0.0, %v73
  %v75 = vpop.f32.mrb[0].mxu0
  %v76 = vpop.f32.mrb[0].mxu0
  %v77 = vadd.f32 0.0, %v76
  %v78 = vpop.f32.mrb[0].mxu0
  %79 = vdwg.mxu0
  %v80 = vmul.f32 %v74, %v74
  %v81 = vmul.f32 %v77, %v77
  %82 = vadd.xlane.f32.xlu0 %v80
  %v83 = vpop.xlane.xlu0 %82
  %84 = vadd.xlane.f32.xlu0 %v81
  %v85 = vpop.xlane.xlu0 %84
  %v86 = vmax.f32 %v83, 1e-24
  %v87 = vmax.f32 %v85, 1e-24
  %v88 = vrsqrt.pop %v86
  %v89 = vrsqrt.pop %v87
  %v90 = vmul.f32 %v74, %v88
  %v91 = vmul.f32 %v77, %v89
  %92 = vst [vmem:[%s2] sm:$0xff] %v90
  %93 = vst [vmem:[%s2 + $0x8] sm:$0xff] %v91
  // Predicated region
  $region10: #{vislang_disc_encoder_forward.3} parent=0 // pred_check
    _
  $region11: #{vislang_disc_encoder_forward.3} parent=0 // pred_check_branch
    %95 = sbr.rel (0) target = $region13
  $region12: #{vislang_disc_encoder_forward.3} parent=0 // pred_region
    _
  $region13: #{vislang_disc_encoder_forward.3} parent=0 // pred_fallthru
    _
  // Predicated region
  $region14: #{vislang_disc_encoder_forward.3} parent=0 // pred_check
    _
  $region15: #{vislang_disc_encoder_forward.3} parent=0 // pred_check_branch
    %97 = sbr.rel (0) target = $region17
  $region16: #{vislang_disc_encoder_forward.3} parent=0 // pred_region
    _
  $region17: #{vislang_disc_encoder_forward.3} parent=0 // pred_fallthru
    _

// kernel: vislang_disc_encoder_forward.2
$region0: #{vislang_disc_encoder_forward.2}
  #allocation0 [shape = 'u32[]', space=smem, size = 0x4, offset = 0x4, fixed_abs, tag = 'smem constant byte address 0x4 - core index']
  #allocation1 [shape = 'u32[144,128]{1,0:T(1,128)}', space=vmem, size = 0x12000, scoped, tag = 'internal scratch']
  %s0 = inlined_call_operand.vmem [shape: bf16[32,64], index: 0, kind: input, shape index: {}]
  %s1 = inlined_call_operand.vmem [shape: bf16[64,128], index: 1, kind: input, shape index: {}]
  %s2 = inlined_call_operand.hbm [shape: f32[32,128], index: 2, kind: output, shape index: {}]
  %s3 = sld [smem:[#allocation0]]
  $region18: #{vislang_disc_encoder_forward.2} parent=0
    _
  %s5 = ssub.s32 1, %s3
  %s6 = scalar_select 0, %s5, %s3
  $region1: #{vislang_disc_encoder_forward.2} parent=0
    #allocation2 [shape = 'u8[16384]{0}', space=vmem, size = 0x4000, scoped, tag = 'output window, operand 0, single buffered']
    #allocation3 [shape = 's32[1]{0}', space=sflag, size = 0x4, scoped, tag = 'scoped memory for vislang_disc_encoder_forward.2']
    %7 = vsyncpa [#allocation3], 0
    // Predicated region
    $region2: #{vislang_disc_encoder_forward.2} parent=1 // pred_check
      _
    $region3: #{vislang_disc_encoder_forward.2} parent=1 // pred_check_branch
      %9 = sbr.rel (0) target = $region5
    $region4: #{vislang_disc_encoder_forward.2} parent=1 // pred_region
      _
    $region5: #{vislang_disc_encoder_forward.2} parent=1 // pred_fallthru
      _
    // Predicated region
    $region6: #{vislang_disc_encoder_forward.2} parent=1 // pred_check
      _
    $region7: #{vislang_disc_encoder_forward.2} parent=1 // pred_check_branch
      %11 = sbr.rel (0) target = $region9
    $region8: #{vislang_disc_encoder_forward.2} parent=1 // pred_region
      _
    $region9: #{vislang_disc_encoder_forward.2} parent=1 // pred_fallthru
      _
    %v13 = vld [vmem:[%s0] sm:$0xf]
    %v14 = vld [vmem:[%s0 + $0x4] sm:$0xf]
    %v15 = vld [vmem:[%s0 + $0x8] sm:$0xf]
    %v16 = vld [vmem:[%s0 + $0xc] sm:$0xf]
    %v17 = vld [vmem:[%s1] sm:$0xf]
    %v18 = vld [vmem:[%s1 + $0x4] sm:$0xf]
    %v19 = vld [vmem:[%s1 + $0x8] sm:$0xf]
    %v20 = vld [vmem:[%s1 + $0xc] sm:$0xf]
    %v21 = vld [vmem:[%s1 + $0x10] sm:$0xf]
    %v22 = vld [vmem:[%s1 + $0x14] sm:$0xf]
    %v23 = vld [vmem:[%s1 + $0x18] sm:$0xf]
    %v24 = vld [vmem:[%s1 + $0x1c] sm:$0xf]
    %v29 = vunpack.c.l.b16 %v13
    %v30 = vunpack.c.l.b16 %v14
    %v31 = vunpack.c.l.b16 %v15
    %v32 = vunpack.c.l.b16 %v16
    %v33 = vpack.c.b16 %v30, %v29
    %v34 = vpack.c.b16 %v32, %v31
    %v43 = vunpack.c.l.b16 %v17
    %v44 = vunpack.c.l.b16 %v18
    %v45 = vunpack.c.l.b16 %v19
    %v46 = vunpack.c.l.b16 %v20
    %v47 = vunpack.c.l.b16 %v21
    %v48 = vunpack.c.l.b16 %v22
    %v49 = vunpack.c.l.b16 %v23
    %v50 = vunpack.c.l.b16 %v24
    %v51 = vpack.c.b16 %v44, %v43
    %v52 = vpack.c.b16 %v46, %v45
    %v53 = vpack.c.b16 %v48, %v47
    %v54 = vpack.c.b16 %v50, %v49
    %vm59 = vcmask 523264
    %v61 = vsel %vm59, %v33, 0
    %v64 = vsel %vm59, %v34, 0
    %66 = vmatprep.subr.bf16.mxu0 0
    %67 = vmatpush1.bf16.msra.mxu0 %v51
    %68 = vmatprep.subr.bf16.mxu0 0
    %69 = vmatpush1.bf16.msra.mxu0 %v52
    %70 = vmatprep.subr.bf16.mxu0 0
    %71 = vmatpush1.bf16.msra.mxu0 %v53
    %72 = vmatprep.subr.bf16.mxu0 0
    %73 = vmatpush1.bf16.msra.mxu0 %v54
    %74 = vmatprep.subr.bf16.mxu0 0
    %75 = vmatpush1.bf16.msra.mxu0 0
    %76 = vmatprep.subr.bf16.mxu0 0
    %77 = vmatpush1.bf16.msra.mxu0 0
    %78 = vmatprep.subr.bf16.mxu0 0
    %79 = vmatpush1.bf16.msra.mxu0 0
    %80 = vmatprep.subr.bf16.mxu0 0
    %81 = vmatpush1.bf16.msra.mxu0 0
    %82 = vmatprep.subr.bf16.mxu0 0
    %83 = vmatpush1.bf16.msra.mxu0 0
    %84 = vmatprep.subr.bf16.mxu0 0
    %85 = vmatpush1.bf16.msra.mxu0 0
    %86 = vmatprep.subr.bf16.mxu0 0
    %87 = vmatpush1.bf16.msra.mxu0 0
    %88 = vmatprep.subr.bf16.mxu0 0
    %89 = vmatpush1.bf16.msra.mxu0 0
    %90 = vmatprep.subr.bf16.mxu0 0
    %91 = vmatpush1.bf16.msra.mxu0 0
    %92 = vmatprep.subr.bf16.mxu0 0
    %93 = vmatpush1.bf16.msra.mxu0 0
    %94 = vmatprep.subr.bf16.mxu0 0
    %95 = vmatpush1.bf16.msra.mxu0 0
    %96 = vmatprep.subr.bf16.mxu0 0
    %97 = vmatpush1.bf16.msra.mxu0 0
    %98 = vmatprep.mubr.bf16.mxu0 0
    %99 = vmatmul.mubr.bf16.gmra.mrb[0].mxu0 %v61
    %v100 = vpop.f32.mrb[0].mxu0
    %v101 = vadd.f32 0.0, %v100
    %v102 = vpop.f32.mrb[0].mxu0
    %v103 = vpop.f32.mrb[0].mxu0
    %v104 = vadd.f32 0.0, %v103
    %v105 = vpop.f32.mrb[0].mxu0
    %106 = vmatprep.mubr.bf16.mxu0 0
    %107 = vmatmul.mubr.bf16.gmra.mrb[0].mxu0 %v64
    %v108 = vpop.f32.mrb[0].mxu0
    %v109 = vadd.f32 0.0, %v108
    %v110 = vpop.f32.mrb[0].mxu0
    %v111 = vpop.f32.mrb[0].mxu0
    %v112 = vadd.f32 0.0, %v111
    %v113 = vpop.f32.mrb[0].mxu0
    %114 = vdwg.mxu0
    %v115 = vmul.f32 %v101, %v101
    %v116 = vmul.f32 %v104, %v104
    %v117 = vmul.f32 %v109, %v109
    %v118 = vmul.f32 %v112, %v112
    %119 = vadd.xlane.f32.xlu0 %v115
    %v120 = vpop.xlane.xlu0 %119
    %121 = vadd.xlane.f32.xlu0 %v116
    %v122 = vpop.xlane.xlu0 %121
    %123 = vadd.xlane.f32.xlu0 %v117
    %v124 = vpop.xlane.xlu0 %123
    %125 = vadd.xlane.f32.xlu0 %v118
    %v126 = vpop.xlane.xlu0 %125
    %v127 = vmax.f32 %v120, 1e-24
    %v128 = vmax.f32 %v122, 1e-24
    %v129 = vmax.f32 %v124, 1e-24
    %v130 = vmax.f32 %v126, 1e-24
    %v131 = vrsqrt.pop %v127
    %v132 = vrsqrt.pop %v128
    %v133 = vrsqrt.pop %v129
    %v134 = vrsqrt.pop %v130
    %v135 = vmul.f32 %v101, %v131
    %v136 = vmul.f32 %v104, %v132
    %v137 = vmul.f32 %v109, %v133
    %v138 = vmul.f32 %v112, %v134
    %139 = vst [vmem:[#allocation2] sm:$0xff] %v135
    %140 = vst [vmem:[#allocation2 + $0x8] sm:$0xff] %v136
    %141 = vst [vmem:[#allocation2 + $0x10] sm:$0xff] %v137
    %142 = vst [vmem:[#allocation2 + $0x18] sm:$0xff] %v138
    // Predicated region
    $region10: #{vislang_disc_encoder_forward.2} parent=1 // pred_check
      _
    $region11: #{vislang_disc_encoder_forward.2} parent=1 // pred_check_branch
      %144 = sbr.rel (0) target = $region13
    $region12: #{vislang_disc_encoder_forward.2} parent=1 // pred_region
      %s146 = ssub.s32 512, 512
      %147 = vsyncadd [#allocation3], %s146
      %s148 = sshll.u32 [#allocation2], 4
      %s149 = int_to_ptr.vmem [resolvable:$true] %s148
      %154 = dma.vmem_to_hbm [thread:$0]  %s149, 512, %s2, [#allocation3], 128, 128, 8
    $region13: #{vislang_disc_encoder_forward.2} parent=1 // pred_fallthru
      _
    // Predicated region
    $region14: #{vislang_disc_encoder_forward.2} parent=1 // pred_check
      _
    $region15: #{vislang_disc_encoder_forward.2} parent=1 // pred_check_branch
      %156 = sbr.rel (0) target = $region17
    $region16: #{vislang_disc_encoder_forward.2} parent=1 // pred_region
      %157 = dma.done [#allocation3], 512
    $region17: #{vislang_disc_encoder_forward.2} parent=1 // pred_fallthru
      _
    %158 = vsyncpa [#allocation3], 1

</llo_original>
